<compile_context>
chip_gen: v7x
topology: tpu7x:2x2x1
jax: 0.10.0
libtpu: 0.0.40
codegen_flags: <defaults>
</compile_context>

<pallas_src>
import jax
import jax.numpy as jnp
from jax.experimental import pallas as pl
from jax.experimental.pallas import tpu as pltpu

VMEM = pltpu.MemorySpace.VMEM
SMEM = pltpu.MemorySpace.SMEM

# ---- static sizes implied by the module -------------------------------------
N_EMB, D_EMB = 10, 12
N_IDX = 9
C_IN, C_OUT, K, STRIDE = 16, 33, 3, 2
L_IN = 4
L_OUT = (L_IN - 1) * STRIDE + K            # 9
H_IN = W_IN = 4
H_OUT = W_OUT = (H_IN - 1) * STRIDE + K    # 9
KK = K * K                                 # 9
L_OUT_PAD = 384                            # 33*9 = 297 -> lane-pad to 384
OHW_PAD = 128                              # 9*9 = 81  -> lane-pad to 128
CO_PAD = 40                                # 33 -> sublane-pad to 40


# ------------------------- fused kernel --------------------------------------
def _fused_kernel(idx_ref, scale_ref, emb_ref, x1_ref, a1_ref, b1_ref,
                  x2_ref, s2_ref, w2_ref, b2_ref,
                  emb_out_ref, y1_ref, y2_ref):
    # ---- quantized Embedding: row gather of the pre-dequantized table --------
    # idx in SMEM; table stored (V, 1, D) so each row is a leading-axis tile.
    rows = [emb_ref[idx_ref[i]] for i in range(N_IDX)]        # 9 x (1, 12)
    emb_out_ref[...] = jnp.concatenate(rows, axis=0)          # single (9,12) store

    # ---- quantized ConvTranspose1d: one exact bf16 MXU matmul ----------------
    # quantize_per_tensor(x, scale=1.0, zero_point=0, quint8): clip(round(x),0,255)
    sc1 = scale_ref[0]
    xq1 = jnp.clip(jnp.round(x1_ref[...]), 0.0, 255.0).astype(jnp.bfloat16)  # (1,64)
    acc1 = jnp.dot(xq1, a1_ref[...], preferred_element_type=jnp.float32)     # (1,384)
    # output requant (module defaults scale=1.0, zero_point=0, quint8)
    y1_ref[...] = jnp.clip(jnp.round(sc1 * acc1 + b1_ref[...]), 0.0, 255.0)

    # ---- quantized ConvTranspose2d: scatter matmul + channel matmul ----------
    sc2 = scale_ref[1]
    xq2 = jnp.clip(jnp.round(x2_ref[...]), 0.0, 255.0).astype(jnp.bfloat16)  # (16,16)
    # v[ci, k*128+ohw] = sum_ihw xq[ci,ihw] * S_k[ihw,ohw]   (0/1 scatter, exact)
    v = jnp.dot(xq2, s2_ref[...], preferred_element_type=jnp.float32)        # (16,1152)
    # regroup to u[k*16+ci, ohw]; entries are xq values <=255 -> exact in bf16
    u = jnp.concatenate(
        [v[:, k * OHW_PAD:(k + 1) * OHW_PAD] for k in range(KK)],
        axis=0).astype(jnp.bfloat16)                                         # (144,128)
    # out_int[co, ohw] = sum_{k,ci} codes2[ci,co,k] * u[k*16+ci, ohw]
    acc2 = jnp.dot(w2_ref[...], u, preferred_element_type=jnp.float32)       # (40,128)
    y2_ref[...] = jnp.clip(jnp.round(sc2 * acc2 + b2_ref[...]), 0.0, 255.0)


def fused_forward(idx, scales, emb_table, x1_flat, a1, b1p, x2_mat, s2flat, w2p, b2p):
    flops = 2 * (x1_flat.shape[1] * a1.shape[1]
                 + x2_mat.shape[0] * x2_mat.shape[1] * s2flat.shape[1]
                 + w2p.shape[0] * w2p.shape[1] * b2p.shape[1])
    in_bytes = sum(int(a.size) * a.dtype.itemsize
                   for a in (idx, scales, emb_table, x1_flat, a1, b1p,
                             x2_mat, s2flat, w2p, b2p))
    out_bytes = 4 * (N_IDX * D_EMB + L_OUT_PAD + CO_PAD * OHW_PAD)
    return pl.pallas_call(
        _fused_kernel,
        out_shape=(
            jax.ShapeDtypeStruct((N_IDX, D_EMB), jnp.float32),   # embedding rows
            jax.ShapeDtypeStruct((1, L_OUT_PAD), jnp.float32),   # conv1 (lane-padded)
            jax.ShapeDtypeStruct((CO_PAD, OHW_PAD), jnp.float32) # conv2 (padded)
        ),
        in_specs=[
            pl.BlockSpec(memory_space=SMEM),   # idx
            pl.BlockSpec(memory_space=SMEM),   # scales (scale1, scale2)
            pl.BlockSpec(memory_space=VMEM),   # emb_table (10,1,12)
            pl.BlockSpec(memory_space=VMEM),   # x1_flat (1,64)
            pl.BlockSpec(memory_space=VMEM),   # A1 codes (64,384) bf16
            pl.BlockSpec(memory_space=VMEM),   # bias1 (1,384)
            pl.BlockSpec(memory_space=VMEM),   # x2_mat (16,16)
            pl.BlockSpec(memory_space=VMEM),   # scatter (16,1152) bf16
            pl.BlockSpec(memory_space=VMEM),   # W2 codes (40,144) bf16
            pl.BlockSpec(memory_space=VMEM),   # bias2 (40,128)
        ],
        out_specs=(pl.BlockSpec(memory_space=VMEM),) * 3,
        cost_estimate=pl.CostEstimate(flops=flops, transcendentals=0,
                                      bytes_accessed=in_bytes + out_bytes),
    )(idx, scales, emb_table, x1_flat, a1, b1p, x2_mat, s2flat, w2p, b2p)


# ------------------------- init-time quantization & operator precompute ------
def _quantize_embedding_per_row_uint8(w):
    wmin = w.min(axis=1, keepdims=True)
    wmax = w.max(axis=1, keepdims=True)
    scale = jnp.maximum((wmax - wmin) / 255.0, 1e-8)
    zp = jnp.clip(jnp.round(-wmin / scale), 0.0, 255.0)
    q = jnp.clip(jnp.round(w / scale) + zp, 0.0, 255.0)
    return (q - zp) * scale  # dequantized (per-row quint8 round-trip)


def _per_tensor_int8_codes(w):
    scale = float(jnp.maximum(jnp.max(jnp.abs(w)), 1e-8) / 127.0)
    codes = jnp.clip(jnp.round(w / scale), -127.0, 127.0)
    return codes, scale


def init_params(key):
    k1, k2, k3, k4, k5 = jax.random.split(key, 5)
    hi = jax.lax.Precision.HIGHEST

    # quantized Embedding(10, 12): per-row quint8 fake-quant, dequantized at init.
    emb_w = jax.random.normal(k1, (N_EMB, D_EMB), jnp.float32)
    emb_table = _quantize_embedding_per_row_uint8(emb_w).reshape(N_EMB, 1, D_EMB)

    # ConvTranspose1d(16, 33, 3, stride=2); torch weight layout (C_in, C_out, K)
    w1 = jax.random.normal(k2, (C_IN, C_OUT, K), jnp.float32) * 0.1
    codes1, scale1 = _per_tensor_int8_codes(w1)
    b1 = jax.random.normal(k3, (C_OUT,), jnp.float32) * 0.1
    i = jnp.arange(L_IN)[:, None]
    o = jnp.arange(L_OUT)[None, :]
    S1 = jnp.stack([(o == (STRIDE * i + k)).astype(jnp.float32) for k in range(K)], 0)
    # folded integer operator A1[(ci*4+i),(co*9+o)] = codes1[ci,co,k]*S1[k,i,o]
    A1 = jnp.einsum("cdk,kio->cido", codes1, S1, precision=hi)
    A1 = A1.transpose(0, 2, 1, 3).reshape(C_IN * L_IN, C_OUT * L_OUT)       # (64,297)
    a1 = jnp.zeros((C_IN * L_IN, L_OUT_PAD), jnp.float32).at[:, :C_OUT * L_OUT].set(A1)
    a1 = a1.astype(jnp.bfloat16)                   # int codes <=127 -> exact in bf16
    b1p = jnp.zeros((1, L_OUT_PAD), jnp.float32).at[:, :C_OUT * L_OUT].set(
        jnp.repeat(b1, L_OUT)[None, :])

    # ConvTranspose2d(16, 33, 3, stride=2); torch weight layout (C_in, C_out, KH, KW)
    w2 = jax.random.normal(k4, (C_IN, C_OUT, K, K), jnp.float32) * 0.1
    codes2, scale2 = _per_tensor_int8_codes(w2)
    b2 = jax.random.normal(k5, (C_OUT,), jnp.float32) * 0.1
    # scatter s2flat[ihw, k*128+ohw] = (oh == 2*ih+kh) & (ow == 2*iw+kw)
    ih, iw = jnp.meshgrid(jnp.arange(H_IN), jnp.arange(W_IN), indexing="ij")
    ih = ih.reshape(-1, 1); iw = iw.reshape(-1, 1)                           # (16,1)
    oh, ow = jnp.meshgrid(jnp.arange(H_OUT), jnp.arange(W_OUT), indexing="ij")
    oh = oh.reshape(1, -1); ow = ow.reshape(1, -1)                           # (1,81)
    blocks = []
    for kh in range(K):
        for kw in range(K):
            m = ((oh == STRIDE * ih + kh) & (ow == STRIDE * iw + kw)).astype(jnp.float32)
            blocks.append(jnp.pad(m, ((0, 0), (0, OHW_PAD - H_OUT * W_OUT))))
    s2flat = jnp.concatenate(blocks, axis=1).astype(jnp.bfloat16)            # (16,1152)
    # channel operator wstack[co, k*16+ci] = codes2[ci, co, kh, kw],  k = kh*3+kw
    wstack = codes2.reshape(C_IN, C_OUT, KK).transpose(1, 2, 0).reshape(C_OUT, KK * C_IN)
    w2p = jnp.zeros((CO_PAD, KK * C_IN), jnp.float32).at[:C_OUT].set(wstack)
    w2p = w2p.astype(jnp.bfloat16)
    b2p = jnp.zeros((CO_PAD, OHW_PAD), jnp.float32).at[:C_OUT, :H_OUT * W_OUT].set(
        jnp.broadcast_to(b2[:, None], (C_OUT, H_OUT * W_OUT)))

    scales = jnp.array([scale1, scale2], jnp.float32)

    # NOTE: ConvTranspose3d(16, 33, 3, stride=2) (conv3) is constructed by the
    # module but never called in forward(), so it is not instantiated here.
    return dict(emb_table=emb_table, scales=scales,
                a1=a1, b1p=b1p, s2flat=s2flat, w2p=w2p, b2p=b2p,
                codes1=codes1, scale1=scale1, b1=b1,
                codes2=codes2, scale2=scale2, b2=b2)


# ------------------------- forward --------------------------------------------
def general_quant_module_forward(params, input1, input2, embedding_idx):
    # QFunctional ops on qint32 constants (scale=1.0, zp=0) round-trip exactly and
    # constant-fold at trace time -> no kernel needed.
    a = jnp.array([3.0], jnp.float32)
    b = jnp.array(4.0, jnp.float32)
    q_add = jnp.round(a + b)                        # (1,)  -> 7
    q_cat = jnp.concatenate([a, a], axis=0)         # (2,)  -> [3, 3]
    q_mul = jnp.round(a * b)                        # -> 12
    q_add_relu = jnp.maximum(jnp.round(a + b), 0.0)
    # TODO(synk): torch QFunctional.add_scalar/mul_scalar expect a Python scalar as
    # the second argument; the module passes a quantized tensor -- we evaluate the
    # arithmetic result instead.
    q_add_s = jnp.round(a + b)
    q_mul_s = jnp.round(a * b)
    c = jnp.array([3.0], jnp.float32)

    # lane-dense flattened activations (batch 1; channel/spatial folded into lanes)
    x1_flat = input1[0].reshape(1, C_IN * L_IN)          # (1, 64)
    x2_mat = input2[0].reshape(C_IN, H_IN * W_IN)        # (16, 16)

    emb, y1p, y2p = fused_forward(
        embedding_idx.reshape(-1).astype(jnp.int32), params["scales"],
        params["emb_table"], x1_flat, params["a1"], params["b1p"],
        x2_mat, params["s2flat"], params["w2p"], params["b2p"])

    y1 = y1p[:, :C_OUT * L_OUT].reshape(1, C_OUT, L_OUT)           # (1, 33, 9)
    y2 = y2p[:C_OUT, :H_OUT * W_OUT].reshape(1, C_OUT, H_OUT, W_OUT)  # (1, 33, 9, 9)

    # TODO(synk): the original forward calls len(...) with 10 positional arguments,
    # which is not valid eager Python; we return the 10 computed results instead.
    return (q_add, q_cat, q_mul, q_add_relu, q_add_s, q_mul_s, emb, y1, y2, c)


if __name__ == "__main__":
    key = jax.random.PRNGKey(0)
    kp, ki1, ki2 = jax.random.split(key, 3)
    params = init_params(kp)
    hi = jax.lax.Precision.HIGHEST

    input1 = jax.random.normal(ki1, (1, C_IN, L_IN), jnp.float32)
    input2 = jax.random.normal(ki2, (1, C_IN, H_IN, W_IN), jnp.float32)
    embedding_idx = jnp.array([9, 6, 5, 7, 8, 8, 9, 2, 8], jnp.int32)

    outs = general_quant_module_forward(params, input1, input2, embedding_idx)
    outs = jax.block_until_ready(outs)

    # ---- sanity checks --------------------------------------------------------
    assert outs[0].shape == (1,) and float(outs[0][0]) == 7.0       # add
    assert outs[1].shape == (2,) and float(outs[1][0]) == 3.0       # cat
    assert outs[2].shape == (1,) and float(outs[2][0]) == 12.0      # mul
    assert outs[3].shape == (1,) and float(outs[3][0]) == 7.0       # add_relu
    assert outs[4].shape == (1,) and float(outs[4][0]) == 7.0       # add_scalar
    assert outs[5].shape == (1,) and float(outs[5][0]) == 12.0      # mul_scalar
    assert outs[9].shape == (1,) and float(outs[9][0]) == 3.0       # c

    # embedding: kernel gather must equal a plain-JAX take of the same table
    assert outs[6].shape == (N_IDX, D_EMB)
    emb_ref = jnp.take(params["emb_table"].reshape(N_EMB, D_EMB), embedding_idx, axis=0)
    assert bool(jnp.allclose(outs[6], emb_ref))

    # conv1 semantic reference: dequantized-weight transposed conv (atol=1.0 absorbs
    # any requant-boundary flip from float summation-order differences)
    xq1 = jnp.clip(jnp.round(input1[0]), 0.0, 255.0)                 # (16, 4)
    w1_deq = params["codes1"] * params["scale1"]                     # (16, 33, 3)
    ref1 = jnp.zeros((C_OUT, L_OUT), jnp.float32)
    for k in range(K):
        contrib = jnp.einsum("ci,cd->di", xq1, w1_deq[:, :, k], precision=hi)
        ref1 = ref1.at[:, k:k + STRIDE * L_IN:STRIDE].add(contrib)
    ref1 = jnp.clip(jnp.round(ref1 + params["b1"][:, None]), 0.0, 255.0)[None]
    assert outs[7].shape == (1, C_OUT, L_OUT)
    assert float(jnp.max(jnp.abs(outs[7] - ref1))) <= 1.0

    # conv2 semantic reference
    xq2 = jnp.clip(jnp.round(input2[0]), 0.0, 255.0)                 # (16, 4, 4)
    w2_deq = params["codes2"] * params["scale2"]                     # (16, 33, 3, 3)
    ref2 = jnp.zeros((C_OUT, H_OUT, W_OUT), jnp.float32)
    for kh in range(K):
        for kw in range(K):
            contrib = jnp.einsum("chw,cd->dhw", xq2, w2_deq[:, :, kh, kw], precision=hi)
            ref2 = ref2.at[:, kh:kh + STRIDE * H_IN:STRIDE,
                           kw:kw + STRIDE * W_IN:STRIDE].add(contrib)
    ref2 = jnp.clip(jnp.round(ref2 + params["b2"][:, None, None]), 0.0, 255.0)[None]
    assert outs[8].shape == (1, C_OUT, H_OUT, W_OUT)
    assert float(jnp.max(jnp.abs(outs[8] - ref2))) <= 1.0

    print("KERNEL_OK")
</pallas_src>

<mosaic_0001>
module attributes {stable_mosaic.version = 11 : i64} {
  func.func @_fused_kernel(%arg0: memref<9xi32, #tpu.memory_space<smem>>, %arg1: memref<2xf32, #tpu.memory_space<smem>>, %arg2: memref<10x1x12xf32, #tpu.memory_space<vmem>>, %arg3: memref<1x64xf32, #tpu.memory_space<vmem>>, %arg4: memref<64x384xbf16, #tpu.memory_space<vmem>>, %arg5: memref<1x384xf32, #tpu.memory_space<vmem>>, %arg6: memref<16x16xf32, #tpu.memory_space<vmem>>, %arg7: memref<16x1152xbf16, #tpu.memory_space<vmem>>, %arg8: memref<40x144xbf16, #tpu.memory_space<vmem>>, %arg9: memref<40x128xf32, #tpu.memory_space<vmem>>, %arg10: memref<9x12xf32, #tpu.memory_space<vmem>>, %arg11: memref<1x384xf32, #tpu.memory_space<vmem>>, %arg12: memref<40x128xf32, #tpu.memory_space<vmem>>) attributes {dimension_semantics = [], scalar_prefetch = 0 : i64, scratch_operands = 0 : i64, tpu.core_type = #tpu.core_type<tc>} {
    %c0 = arith.constant 0 : index
    %0 = memref.load %arg0[%c0] : memref<9xi32, #tpu.memory_space<smem>>
    %1 = arith.index_cast %0 : i32 to index
    %c0_0 = arith.constant 0 : index
    %c0_1 = arith.constant 0 : index
    %2 = vector.load %arg2[%1, %c0_0, %c0_1] : memref<10x1x12xf32, #tpu.memory_space<vmem>>, vector<1x1x12xf32>
    %3 = vector.shape_cast %2 : vector<1x1x12xf32> to vector<1x12xf32>
    %c1 = arith.constant 1 : index
    %4 = memref.load %arg0[%c1] : memref<9xi32, #tpu.memory_space<smem>>
    %5 = arith.index_cast %4 : i32 to index
    %c0_2 = arith.constant 0 : index
    %c0_3 = arith.constant 0 : index
    %6 = vector.load %arg2[%5, %c0_2, %c0_3] : memref<10x1x12xf32, #tpu.memory_space<vmem>>, vector<1x1x12xf32>
    %7 = vector.shape_cast %6 : vector<1x1x12xf32> to vector<1x12xf32>
    %c2 = arith.constant 2 : index
    %8 = memref.load %arg0[%c2] : memref<9xi32, #tpu.memory_space<smem>>
    %9 = arith.index_cast %8 : i32 to index
    %c0_4 = arith.constant 0 : index
    %c0_5 = arith.constant 0 : index
    %10 = vector.load %arg2[%9, %c0_4, %c0_5] : memref<10x1x12xf32, #tpu.memory_space<vmem>>, vector<1x1x12xf32>
    %11 = vector.shape_cast %10 : vector<1x1x12xf32> to vector<1x12xf32>
    %c3 = arith.constant 3 : index
    %12 = memref.load %arg0[%c3] : memref<9xi32, #tpu.memory_space<smem>>
    %13 = arith.index_cast %12 : i32 to index
    %c0_6 = arith.constant 0 : index
    %c0_7 = arith.constant 0 : index
    %14 = vector.load %arg2[%13, %c0_6, %c0_7] : memref<10x1x12xf32, #tpu.memory_space<vmem>>, vector<1x1x12xf32>
    %15 = vector.shape_cast %14 : vector<1x1x12xf32> to vector<1x12xf32>
    %c4 = arith.constant 4 : index
    %16 = memref.load %arg0[%c4] : memref<9xi32, #tpu.memory_space<smem>>
    %17 = arith.index_cast %16 : i32 to index
    %c0_8 = arith.constant 0 : index
    %c0_9 = arith.constant 0 : index
    %18 = vector.load %arg2[%17, %c0_8, %c0_9] : memref<10x1x12xf32, #tpu.memory_space<vmem>>, vector<1x1x12xf32>
    %19 = vector.shape_cast %18 : vector<1x1x12xf32> to vector<1x12xf32>
    %c5 = arith.constant 5 : index
    %20 = memref.load %arg0[%c5] : memref<9xi32, #tpu.memory_space<smem>>
    %21 = arith.index_cast %20 : i32 to index
    %c0_10 = arith.constant 0 : index
    %c0_11 = arith.constant 0 : index
    %22 = vector.load %arg2[%21, %c0_10, %c0_11] : memref<10x1x12xf32, #tpu.memory_space<vmem>>, vector<1x1x12xf32>
    %23 = vector.shape_cast %22 : vector<1x1x12xf32> to vector<1x12xf32>
    %c6 = arith.constant 6 : index
    %24 = memref.load %arg0[%c6] : memref<9xi32, #tpu.memory_space<smem>>
    %25 = arith.index_cast %24 : i32 to index
    %c0_12 = arith.constant 0 : index
    %c0_13 = arith.constant 0 : index
    %26 = vector.load %arg2[%25, %c0_12, %c0_13] : memref<10x1x12xf32, #tpu.memory_space<vmem>>, vector<1x1x12xf32>
    %27 = vector.shape_cast %26 : vector<1x1x12xf32> to vector<1x12xf32>
    %c7 = arith.constant 7 : index
    %28 = memref.load %arg0[%c7] : memref<9xi32, #tpu.memory_space<smem>>
    %29 = arith.index_cast %28 : i32 to index
    %c0_14 = arith.constant 0 : index
    %c0_15 = arith.constant 0 : index
    %30 = vector.load %arg2[%29, %c0_14, %c0_15] : memref<10x1x12xf32, #tpu.memory_space<vmem>>, vector<1x1x12xf32>
    %31 = vector.shape_cast %30 : vector<1x1x12xf32> to vector<1x12xf32>
    %c8 = arith.constant 8 : index
    %32 = memref.load %arg0[%c8] : memref<9xi32, #tpu.memory_space<smem>>
    %33 = arith.index_cast %32 : i32 to index
    %c0_16 = arith.constant 0 : index
    %c0_17 = arith.constant 0 : index
    %34 = vector.load %arg2[%33, %c0_16, %c0_17] : memref<10x1x12xf32, #tpu.memory_space<vmem>>, vector<1x1x12xf32>
    %35 = vector.shape_cast %34 : vector<1x1x12xf32> to vector<1x12xf32>
    %36 = tpu.concatenate %3, %7, %11, %15, %19, %23, %27, %31, %35 in 0 : vector<1x12xf32>, vector<1x12xf32>, vector<1x12xf32>, vector<1x12xf32>, vector<1x12xf32>, vector<1x12xf32>, vector<1x12xf32>, vector<1x12xf32>, vector<1x12xf32> -> vector<9x12xf32>
    %c0_18 = arith.constant 0 : index
    %c0_19 = arith.constant 0 : index
    %37 = vector.load %arg10[%c0_18, %c0_19] : memref<9x12xf32, #tpu.memory_space<vmem>>, vector<9x12xf32>
    tpu.vector_store %arg10[%c0_18, %c0_19], %36 {strides = array<i32>} : memref<9x12xf32, #tpu.memory_space<vmem>>, vector<9x12xf32>,
    %c0_20 = arith.constant 0 : index
    %38 = memref.load %arg1[%c0_20] : memref<2xf32, #tpu.memory_space<smem>>
    %c0_21 = arith.constant 0 : index
    %c0_22 = arith.constant 0 : index
    %39 = vector.load %arg3[%c0_21, %c0_22] : memref<1x64xf32, #tpu.memory_space<vmem>>, vector<1x64xf32>
    %40 = math.roundeven %39 : vector<1x64xf32>
    %cst = arith.constant 0.000000e+00 : f32
    %cst_23 = arith.constant 2.550000e+02 : f32
    %41 = vector.broadcast %cst : f32 to vector<1x64xf32>
    %42 = arith.maximumf %41, %40 : vector<1x64xf32>
    %43 = vector.broadcast %cst_23 : f32 to vector<1x64xf32>
    %44 = arith.minimumf %43, %42 : vector<1x64xf32>
    %45 = arith.truncf %44 : vector<1x64xf32> to vector<1x64xbf16>
    %c0_24 = arith.constant 0 : index
    %c0_25 = arith.constant 0 : index
    %46 = vector.load %arg4[%c0_24, %c0_25] : memref<64x384xbf16, #tpu.memory_space<vmem>>, vector<64x384xbf16>
    %cst_26 = arith.constant dense<0.000000e+00> : vector<1x384xf32>
    %47 = tpu.matmul %45, %46, %cst_26 {dimension_numbers = #tpu.dot_dimension_numbers<[1], [0], [0], [1], [0, 0, 1, 1], [], []>} : vector<1x64xbf16>, vector<64x384xbf16>, vector<1x384xf32> -> vector<1x384xf32>
    %48 = vector.broadcast %38 : f32 to vector<1x384xf32>
    %49 = arith.mulf %48, %47 : vector<1x384xf32>
    %c0_27 = arith.constant 0 : index
    %c0_28 = arith.constant 0 : index
    %50 = vector.load %arg5[%c0_27, %c0_28] : memref<1x384xf32, #tpu.memory_space<vmem>>, vector<1x384xf32>
    %51 = arith.addf %49, %50 : vector<1x384xf32>
    %52 = math.roundeven %51 : vector<1x384xf32>
    %cst_29 = arith.constant 0.000000e+00 : f32
    %cst_30 = arith.constant 2.550000e+02 : f32
    %53 = vector.broadcast %cst_29 : f32 to vector<1x384xf32>
    %54 = arith.maximumf %53, %52 : vector<1x384xf32>
    %55 = vector.broadcast %cst_30 : f32 to vector<1x384xf32>
    %56 = arith.minimumf %55, %54 : vector<1x384xf32>
    %c0_31 = arith.constant 0 : index
    %c0_32 = arith.constant 0 : index
    %57 = vector.load %arg11[%c0_31, %c0_32] : memref<1x384xf32, #tpu.memory_space<vmem>>, vector<1x384xf32>
    tpu.vector_store %arg11[%c0_31, %c0_32], %56 {strides = array<i32>} : memref<1x384xf32, #tpu.memory_space<vmem>>, vector<1x384xf32>,
    %c1_33 = arith.constant 1 : index
    %58 = memref.load %arg1[%c1_33] : memref<2xf32, #tpu.memory_space<smem>>
    %c0_34 = arith.constant 0 : index
    %c0_35 = arith.constant 0 : index
    %59 = vector.load %arg6[%c0_34, %c0_35] : memref<16x16xf32, #tpu.memory_space<vmem>>, vector<16x16xf32>
    %60 = math.roundeven %59 : vector<16x16xf32>
    %cst_36 = arith.constant 0.000000e+00 : f32
    %cst_37 = arith.constant 2.550000e+02 : f32
    %61 = vector.broadcast %cst_36 : f32 to vector<16x16xf32>
    %62 = arith.maximumf %61, %60 : vector<16x16xf32>
    %63 = vector.broadcast %cst_37 : f32 to vector<16x16xf32>
    %64 = arith.minimumf %63, %62 : vector<16x16xf32>
    %65 = arith.truncf %64 : vector<16x16xf32> to vector<16x16xbf16>
    %c0_38 = arith.constant 0 : index
    %c0_39 = arith.constant 0 : index
    %66 = vector.load %arg7[%c0_38, %c0_39] : memref<16x1152xbf16, #tpu.memory_space<vmem>>, vector<16x1152xbf16>
    %cst_40 = arith.constant dense<0.000000e+00> : vector<16x1152xf32>
    %67 = tpu.matmul %65, %66, %cst_40 {dimension_numbers = #tpu.dot_dimension_numbers<[1], [0], [0], [1], [0, 0, 1, 1], [], []>} : vector<16x16xbf16>, vector<16x1152xbf16>, vector<16x1152xf32> -> vector<16x1152xf32>
    %68 = vector.extract_strided_slice %67 {offsets = [0, 0], sizes = [16, 128], strides = [1, 1]} : vector<16x1152xf32> to vector<16x128xf32>
    %69 = vector.extract_strided_slice %67 {offsets = [0, 128], sizes = [16, 128], strides = [1, 1]} : vector<16x1152xf32> to vector<16x128xf32>
    %70 = vector.extract_strided_slice %67 {offsets = [0, 256], sizes = [16, 128], strides = [1, 1]} : vector<16x1152xf32> to vector<16x128xf32>
    %71 = vector.extract_strided_slice %67 {offsets = [0, 384], sizes = [16, 128], strides = [1, 1]} : vector<16x1152xf32> to vector<16x128xf32>
    %72 = vector.extract_strided_slice %67 {offsets = [0, 512], sizes = [16, 128], strides = [1, 1]} : vector<16x1152xf32> to vector<16x128xf32>
    %73 = vector.extract_strided_slice %67 {offsets = [0, 640], sizes = [16, 128], strides = [1, 1]} : vector<16x1152xf32> to vector<16x128xf32>
    %74 = vector.extract_strided_slice %67 {offsets = [0, 768], sizes = [16, 128], strides = [1, 1]} : vector<16x1152xf32> to vector<16x128xf32>
    %75 = vector.extract_strided_slice %67 {offsets = [0, 896], sizes = [16, 128], strides = [1, 1]} : vector<16x1152xf32> to vector<16x128xf32>
    %76 = vector.extract_strided_slice %67 {offsets = [0, 1024], sizes = [16, 128], strides = [1, 1]} : vector<16x1152xf32> to vector<16x128xf32>
    %77 = tpu.concatenate %68, %69, %70, %71, %72, %73, %74, %75, %76 in 0 : vector<16x128xf32>, vector<16x128xf32>, vector<16x128xf32>, vector<16x128xf32>, vector<16x128xf32>, vector<16x128xf32>, vector<16x128xf32>, vector<16x128xf32>, vector<16x128xf32> -> vector<144x128xf32>
    %78 = arith.truncf %77 : vector<144x128xf32> to vector<144x128xbf16>
    %c0_41 = arith.constant 0 : index
    %c0_42 = arith.constant 0 : index
    %79 = vector.load %arg8[%c0_41, %c0_42] : memref<40x144xbf16, #tpu.memory_space<vmem>>, vector<40x144xbf16>
    %cst_43 = arith.constant dense<0.000000e+00> : vector<40x128xf32>
    %80 = tpu.matmul %79, %78, %cst_43 {dimension_numbers = #tpu.dot_dimension_numbers<[1], [0], [0], [1], [0, 0, 1, 1], [], []>} : vector<40x144xbf16>, vector<144x128xbf16>, vector<40x128xf32> -> vector<40x128xf32>
    %81 = vector.broadcast %58 : f32 to vector<40x128xf32>
    %82 = arith.mulf %81, %80 : vector<40x128xf32>
    %c0_44 = arith.constant 0 : index
    %c0_45 = arith.constant 0 : index
    %83 = vector.load %arg9[%c0_44, %c0_45] : memref<40x128xf32, #tpu.memory_space<vmem>>, vector<40x128xf32>
    %84 = arith.addf %82, %83 : vector<40x128xf32>
    %85 = math.roundeven %84 : vector<40x128xf32>
    %cst_46 = arith.constant 0.000000e+00 : f32
    %cst_47 = arith.constant 2.550000e+02 : f32
    %86 = vector.broadcast %cst_46 : f32 to vector<40x128xf32>
    %87 = arith.maximumf %86, %85 : vector<40x128xf32>
    %88 = vector.broadcast %cst_47 : f32 to vector<40x128xf32>
    %89 = arith.minimumf %88, %87 : vector<40x128xf32>
    %c0_48 = arith.constant 0 : index
    %c0_49 = arith.constant 0 : index
    %90 = vector.load %arg12[%c0_48, %c0_49] : memref<40x128xf32, #tpu.memory_space<vmem>>, vector<40x128xf32>
    tpu.vector_store %arg12[%c0_48, %c0_49], %89 {strides = array<i32>} : memref<40x128xf32, #tpu.memory_space<vmem>>, vector<40x128xf32>,
    return
  }
}

</mosaic_0001>

<llo_original>
// kernel: tpu_custom_call.1
$region0: #{tpu_custom_call.1}
  #allocation0 [shape = 'u32[]', space=smem, size = 0x4, offset = 0x4, fixed_abs, tag = 'smem constant byte address 0x4 - core index']
  #allocation1 [shape = 'u32[144,128]{1,0:T(1,128)}', space=vmem, size = 0x12000, scoped, tag = 'internal scratch']
  %s0 = inlined_call_operand.hbm [shape: s32[9], index: 0, kind: input, shape index: {}]
  %s1 = inlined_call_operand.vmem [shape: f32[2], index: 1, kind: input, shape index: {}]
  %s2 = inlined_call_operand.hbm [shape: f32[10,1,12], index: 2, kind: input, shape index: {}]
  %s3 = inlined_call_operand.vmem [shape: f32[1,64], index: 3, kind: input, shape index: {}]
  %s4 = inlined_call_operand.hbm [shape: bf16[64,384], index: 4, kind: input, shape index: {}]
  %s5 = inlined_call_operand.vmem [shape: f32[1,384], index: 5, kind: input, shape index: {}]
  %s6 = inlined_call_operand.vmem [shape: f32[16,16], index: 6, kind: input, shape index: {}]
  %s7 = inlined_call_operand.hbm [shape: bf16[16,1152], index: 7, kind: input, shape index: {}]
  %s8 = inlined_call_operand.hbm [shape: bf16[40,144], index: 8, kind: input, shape index: {}]
  %s9 = inlined_call_operand.hbm [shape: f32[40,128], index: 9, kind: input, shape index: {}]
  %s10 = inlined_call_operand.hbm [shape: f32[9,12], index: 10, kind: output, shape index: {0}]
  %s11 = inlined_call_operand.hbm [shape: f32[1,384], index: 11, kind: output, shape index: {1}]
  %s12 = inlined_call_operand.hbm [shape: f32[40,128], index: 12, kind: output, shape index: {2}]
  %13 = xla_tuple %s10, %s11, %s12
  %s14 = sld [smem:[#allocation0]]
  $region94: #{tpu_custom_call.1} parent=0
    _
  %s16 = ssub.s32 1, %s14
  %s17 = scalar_select 0, %s16, %s14
  $region1: #{tpu_custom_call.1} parent=0
    #allocation2 [shape = 'u8[512]{0}', space=smem, size = 0x200, scoped, tag = 'input window, operand 0, single buffered']
    #allocation3 [shape = 's32[1]{0}', space=sflag, size = 0x4, scoped, tag = 'scoped memory for tpu_custom_call.1']
    #allocation4 [shape = 's32[1]{0}', space=sflag, size = 0x4, scoped, tag = 'scoped memory for tpu_custom_call.1']
    #allocation5 [shape = 's32[1]{0}', space=sflag, size = 0x4, scoped, tag = 'scoped memory for tpu_custom_call.1']
    #allocation6 [shape = 's32[1]{0}', space=sflag, size = 0x4, scoped, tag = 'scoped memory for tpu_custom_call.1']
    #allocation7 [shape = 'u8[512]{0}', space=smem, size = 0x200, scoped, tag = 'input window, operand 1, single buffered']
    #allocation8 [shape = 'u8[5120]{0}', space=vmem, size = 0x1400, scoped, tag = 'input window, operand 2, single buffered']
    #allocation9 [shape = 'u8[49152]{0}', space=vmem, size = 0xc000, scoped, tag = 'input window, operand 4, single buffered']
    #allocation10 [shape = 's32[1]{0}', space=sflag, size = 0x4, scoped, tag = 'scoped memory for tpu_custom_call.1']
    #allocation11 [shape = 'u8[36864]{0}', space=vmem, size = 0x9000, scoped, tag = 'input window, operand 7, single buffered']
    #allocation12 [shape = 'u8[20480]{0}', space=vmem, size = 0x5000, scoped, tag = 'input window, operand 8, single buffered']
    #allocation13 [shape = 's32[1]{0}', space=sflag, size = 0x4, scoped, tag = 'scoped memory for tpu_custom_call.1']
    #allocation14 [shape = 'u8[20480]{0}', space=vmem, size = 0x5000, scoped, tag = 'input window, operand 9, single buffered']
    #allocation15 [shape = 'u8[8192]{0}', space=vmem, size = 0x2000, scoped, tag = 'output window, operand 0, single buffered']
    #allocation16 [shape = 'u8[1536]{0}', space=vmem, size = 0x800, scoped, tag = 'output window, operand 1, single buffered']
    #allocation17 [shape = 's32[1]{0}', space=sflag, size = 0x4, scoped, tag = 'scoped memory for tpu_custom_call.1']
    #allocation18 [shape = 'u8[20480]{0}', space=vmem, size = 0x5000, scoped, tag = 'output window, operand 2, single buffered']
    %18 = vsyncpa [#allocation5], 0
    %19 = vsyncpa [#allocation6], 0
    %20 = vsyncpa [#allocation3], 0
    %21 = vsyncpa [#allocation10], 0
    %22 = vsyncpa [#allocation13], 0
    %23 = vsyncpa [#allocation4], 0
    %24 = vsyncpa [#allocation17], 0
    // Predicated region
    $region2: #{tpu_custom_call.1} parent=1 // pred_check
      _
    $region3: #{tpu_custom_call.1} parent=1 // pred_check_branch
      %26 = sbr.rel (0) target = $region5
    $region4: #{tpu_custom_call.1} parent=1 // pred_region
      %s28 = ssub.s32 16, 16
      %29 = vsyncadd [#allocation5], %s28
      %32 = dma.hbm_to_smem %s0, 16, [#allocation2], [#allocation5]
    $region5: #{tpu_custom_call.1} parent=1 // pred_fallthru
      _
    // Predicated region
    $region6: #{tpu_custom_call.1} parent=1 // pred_check
      _
    $region7: #{tpu_custom_call.1} parent=1 // pred_check_branch
      %34 = sbr.rel (0) target = $region9
    $region8: #{tpu_custom_call.1} parent=1 // pred_region
      %s36 = ssub.s32 16, 16
      %37 = vsyncadd [#allocation6], %s36
      %s39 = sshll.u32 %s1, 4
      %s40 = int_to_ptr.vmem [resolvable:$true] %s39
      %42 = dma.vmem_to_smem %s40, 16, [#allocation7], [#allocation6]
    $region9: #{tpu_custom_call.1} parent=1 // pred_fallthru
      _
    // Predicated region
    $region10: #{tpu_custom_call.1} parent=1 // pred_check
      _
    $region11: #{tpu_custom_call.1} parent=1 // pred_check_branch
      %44 = sbr.rel (0) target = $region13
    $region12: #{tpu_custom_call.1} parent=1 // pred_region
      %s46 = ssub.s32 160, 160
      %47 = vsyncadd [#allocation3], %s46
      %s48 = sshll.u32 [#allocation8], 4
      %s49 = int_to_ptr.vmem [resolvable:$true] %s48
      %54 = dma.hbm_to_vmem [thread:$0]  %s2, 160, %s49, [#allocation3], 16, 16, 1
    $region13: #{tpu_custom_call.1} parent=1 // pred_fallthru
      _
    // Predicated region
    $region14: #{tpu_custom_call.1} parent=1 // pred_check
      _
    $region15: #{tpu_custom_call.1} parent=1 // pred_check_branch
      %56 = sbr.rel (0) target = $region17
    $region16: #{tpu_custom_call.1} parent=1 // pred_region
      _
    $region17: #{tpu_custom_call.1} parent=1 // pred_fallthru
      _
    // Predicated region
    $region18: #{tpu_custom_call.1} parent=1 // pred_check
      _
    $region19: #{tpu_custom_call.1} parent=1 // pred_check_branch
      %58 = sbr.rel (0) target = $region21
    $region20: #{tpu_custom_call.1} parent=1 // pred_region
      %s60 = ssub.s32 1536, 1536
      %61 = vsyncadd [#allocation10], %s60
      %s62 = sshll.u32 [#allocation9], 4
      %s63 = int_to_ptr.vmem [resolvable:$true] %s62
      %68 = dma.hbm_to_vmem [thread:$0]  %s4, 1536, %s63, [#allocation10], 192, 192, 12
    $region21: #{tpu_custom_call.1} parent=1 // pred_fallthru
      _
    // Predicated region
    $region22: #{tpu_custom_call.1} parent=1 // pred_check
      _
    $region23: #{tpu_custom_call.1} parent=1 // pred_check_branch
      %70 = sbr.rel (0) target = $region25
    $region24: #{tpu_custom_call.1} parent=1 // pred_region
      _
    $region25: #{tpu_custom_call.1} parent=1 // pred_fallthru
      _
    // Predicated region
    $region26: #{tpu_custom_call.1} parent=1 // pred_check
      _
    $region27: #{tpu_custom_call.1} parent=1 // pred_check_branch
      %72 = sbr.rel (0) target = $region29
    $region28: #{tpu_custom_call.1} parent=1 // pred_region
      _
    $region29: #{tpu_custom_call.1} parent=1 // pred_fallthru
      _
    // Predicated region
    $region30: #{tpu_custom_call.1} parent=1 // pred_check
      _
    $region31: #{tpu_custom_call.1} parent=1 // pred_check_branch
      %74 = sbr.rel (0) target = $region33
    $region32: #{tpu_custom_call.1} parent=1 // pred_region
      %s76 = ssub.s32 1152, 1152
      %77 = vsyncadd [#allocation10], %s76
      %s78 = sshll.u32 [#allocation11], 4
      %s79 = int_to_ptr.vmem [resolvable:$true] %s78
      %84 = dma.hbm_to_vmem [thread:$0]  %s7, 1152, %s79, [#allocation10], 576, 576, 36
    $region33: #{tpu_custom_call.1} parent=1 // pred_fallthru
      _
    // Predicated region
    $region34: #{tpu_custom_call.1} parent=1 // pred_check
      _
    $region35: #{tpu_custom_call.1} parent=1 // pred_check_branch
      %86 = sbr.rel (0) target = $region37
    $region36: #{tpu_custom_call.1} parent=1 // pred_region
      %s88 = ssub.s32 640, 640
      %89 = vsyncadd [#allocation13], %s88
      %s90 = sshll.u32 [#allocation12], 4
      %s91 = int_to_ptr.vmem [resolvable:$true] %s90
      %96 = dma.hbm_to_vmem [thread:$0]  %s8, 640, %s91, [#allocation13], 128, 128, 8
    $region37: #{tpu_custom_call.1} parent=1 // pred_fallthru
      _
    // Predicated region
    $region38: #{tpu_custom_call.1} parent=1 // pred_check
      _
    $region39: #{tpu_custom_call.1} parent=1 // pred_check_branch
      %98 = sbr.rel (0) target = $region41
    $region40: #{tpu_custom_call.1} parent=1 // pred_region
      %s100 = ssub.s32 640, 640
      %101 = vsyncadd [#allocation13], %s100
      %s102 = sshll.u32 [#allocation14], 4
      %s103 = int_to_ptr.vmem [resolvable:$true] %s102
      %108 = dma.hbm_to_vmem [thread:$0]  %s9, 640, %s103, [#allocation13], 128, 128, 8
    $region41: #{tpu_custom_call.1} parent=1 // pred_fallthru
      _
    // Predicated region
    $region42: #{tpu_custom_call.1} parent=1 // pred_check
      _
    $region43: #{tpu_custom_call.1} parent=1 // pred_check_branch
      %110 = sbr.rel (0) target = $region45
    $region44: #{tpu_custom_call.1} parent=1 // pred_region
      %111 = dma.done [#allocation5], 16
    $region45: #{tpu_custom_call.1} parent=1 // pred_fallthru
      _
    // Predicated region
    $region46: #{tpu_custom_call.1} parent=1 // pred_check
      _
    $region47: #{tpu_custom_call.1} parent=1 // pred_check_branch
      %113 = sbr.rel (0) target = $region49
    $region48: #{tpu_custom_call.1} parent=1 // pred_region
      %114 = dma.done [#allocation6], 16
    $region49: #{tpu_custom_call.1} parent=1 // pred_fallthru
      _
    // Predicated region
    $region50: #{tpu_custom_call.1} parent=1 // pred_check
      _
    $region51: #{tpu_custom_call.1} parent=1 // pred_check_branch
      %116 = sbr.rel (0) target = $region53
    $region52: #{tpu_custom_call.1} parent=1 // pred_region
      %117 = dma.done [#allocation3], 160
    $region53: #{tpu_custom_call.1} parent=1 // pred_fallthru
      _
    // Predicated region
    $region54: #{tpu_custom_call.1} parent=1 // pred_check
      _
    $region55: #{tpu_custom_call.1} parent=1 // pred_check_branch
      %119 = sbr.rel (0) target = $region57
    $region56: #{tpu_custom_call.1} parent=1 // pred_region
      %120 = dma.done [#allocation10], 1536
    $region57: #{tpu_custom_call.1} parent=1 // pred_fallthru
      _
    // Predicated region
    $region58: #{tpu_custom_call.1} parent=1 // pred_check
      _
    $region59: #{tpu_custom_call.1} parent=1 // pred_check_branch
      %122 = sbr.rel (0) target = $region61
    $region60: #{tpu_custom_call.1} parent=1 // pred_region
      %123 = dma.done [#allocation10], 1152
    $region61: #{tpu_custom_call.1} parent=1 // pred_fallthru
      _
    // Predicated region
    $region62: #{tpu_custom_call.1} parent=1 // pred_check
      _
    $region63: #{tpu_custom_call.1} parent=1 // pred_check_branch
      %125 = sbr.rel (0) target = $region65
    $region64: #{tpu_custom_call.1} parent=1 // pred_region
      %126 = dma.done [#allocation13], 640
    $region65: #{tpu_custom_call.1} parent=1 // pred_fallthru
      _
    // Predicated region
    $region66: #{tpu_custom_call.1} parent=1 // pred_check
      _
    $region67: #{tpu_custom_call.1} parent=1 // pred_check_branch
      %128 = sbr.rel (0) target = $region69
    $region68: #{tpu_custom_call.1} parent=1 // pred_region
      %129 = dma.done [#allocation13], 640
    $region69: #{tpu_custom_call.1} parent=1 // pred_fallthru
      _
    %130 = sfence
    %s132 = sld [smem:[#allocation2]]
    %s133 = scalar_lea.vmem [#allocation8], %s132
    %v134 = vld [vmem:[%s133] sm:$0x1]
    %s135 = sld [smem:[#allocation2 + $0x1]]
    %s136 = scalar_lea.vmem [#allocation8], %s135
    %v137 = vld [vmem:[%s136] sm:$0x1]
    %s138 = sld [smem:[#allocation2 + $0x2]]
    %s139 = scalar_lea.vmem [#allocation8], %s138
    %v140 = vld [vmem:[%s139] sm:$0x1]
    %s141 = sld [smem:[#allocation2 + $0x3]]
    %s142 = scalar_lea.vmem [#allocation8], %s141
    %v143 = vld [vmem:[%s142] sm:$0x1]
    %s144 = sld [smem:[#allocation2 + $0x4]]
    %s145 = scalar_lea.vmem [#allocation8], %s144
    %v146 = vld [vmem:[%s145] sm:$0x1]
    %s147 = sld [smem:[#allocation2 + $0x5]]
    %s148 = scalar_lea.vmem [#allocation8], %s147
    %v149 = vld [vmem:[%s148] sm:$0x1]
    %s150 = sld [smem:[#allocation2 + $0x6]]
    %s151 = scalar_lea.vmem [#allocation8], %s150
    %v152 = vld [vmem:[%s151] sm:$0x1]
    %s153 = sld [smem:[#allocation2 + $0x7]]
    %s154 = scalar_lea.vmem [#allocation8], %s153
    %v155 = vld [vmem:[%s154] sm:$0x1]
    %s156 = sld [smem:[#allocation2 + $0x8]]
    %s157 = scalar_lea.vmem [#allocation8], %s156
    %v158 = vld [vmem:[%s157] sm:$0x1]
    %v160 = vlaneseq
    %v161 = vshrl.u32 %v160, 7
    %v162 = vsub.s32 0, %v161
    %v163 = vrot.slane %v137, %v162
    %v166 = vlaneseq
    %v167 = vshrl.u32 %v166, 7
    %v168 = vsub.s32 0, %v167
    %v169 = vrot.slane %v140, %v168
    %v172 = vlaneseq
    %v173 = vshrl.u32 %v172, 7
    %v174 = vsub.s32 0, %v173
    %v175 = vrot.slane %v143, %v174
    %v178 = vlaneseq
    %v179 = vshrl.u32 %v178, 7
    %v180 = vsub.s32 0, %v179
    %v181 = vrot.slane %v146, %v180
    %v184 = vlaneseq
    %v185 = vshrl.u32 %v184, 7
    %v186 = vsub.s32 0, %v185
    %v187 = vrot.slane %v149, %v186
    %v190 = vlaneseq
    %v191 = vshrl.u32 %v190, 7
    %v192 = vsub.s32 0, %v191
    %v193 = vrot.slane %v152, %v192
    %v196 = vlaneseq
    %v197 = vshrl.u32 %v196, 7
    %v198 = vsub.s32 0, %v197
    %v199 = vrot.slane %v155, %v198
    %vm201 = vcmask 1040384
    %v202 = vsel %vm201, %v134, %v163
    %vm203 = vcmask 1041408
    %v204 = vsel %vm203, %v202, %v169
    %vm205 = vcmask 1042432
    %v206 = vsel %vm205, %v204, %v175
    %vm207 = vcmask 1043456
    %v208 = vsel %vm207, %v206, %v181
    %vm209 = vcmask 1044480
    %v210 = vsel %vm209, %v208, %v187
    %vm211 = vcmask 1045504
    %v212 = vsel %vm211, %v210, %v193
    %vm213 = vcmask 1046528
    %v214 = vsel %vm213, %v212, %v199
    %vm215 = vcmask 97280
    %216 = vst.msk [vmem:[#allocation15] sm:$0xff] %vm215, %v214
    %vm217 = vcmask 90112
    %218 = vst.msk [vmem:[#allocation15 + $0x8] sm:$0x1] %vm217, %v158
    %s219 = sld [smem:[#allocation7]]
    %v220 = vld [vmem:[%s3] sm:$0x1]
    %v221 = vround.ne.pseudo %v220
    %v222 = vmax.f32 %v221, 0.0
    %v223 = vmin.f32 %v222, 255.0
    %v224 = vpack.c.bf16 %v223, %v223
    %v225 = vld [vmem:[#allocation9] sm:$0xff]
    %v226 = vld [vmem:[#allocation9 + $0x8] sm:$0xf]
    %v227 = vld [vmem:[#allocation9 + $0xc] sm:$0xff]
    %v228 = vld [vmem:[#allocation9 + $0x14] sm:$0xf]
    %v229 = vld [vmem:[#allocation9 + $0x18] sm:$0xff]
    %v230 = vld [vmem:[#allocation9 + $0x20] sm:$0xf]
    %v231 = vld [vmem:[#allocation9 + $0x24] sm:$0xff]
    %v232 = vld [vmem:[#allocation9 + $0x2c] sm:$0xf]
    %v233 = vld [vmem:[#allocation9 + $0x30] sm:$0xff]
    %v234 = vld [vmem:[#allocation9 + $0x38] sm:$0xf]
    %v235 = vld [vmem:[#allocation9 + $0x3c] sm:$0xff]
    %v236 = vld [vmem:[#allocation9 + $0x44] sm:$0xf]
    %v237 = vld [vmem:[#allocation9 + $0x48] sm:$0xff]
    %v238 = vld [vmem:[#allocation9 + $0x50] sm:$0xf]
    %v239 = vld [vmem:[#allocation9 + $0x54] sm:$0xff]
    %v240 = vld [vmem:[#allocation9 + $0x5c] sm:$0xf]
    %v257 = vunpack.c.l.b16 %v225
    %v258 = vunpack.c.h.b16 %v225
    %v259 = vunpack.c.l.b16 %v226
    %v260 = vunpack.c.l.b16 %v227
    %v261 = vunpack.c.h.b16 %v227
    %v262 = vunpack.c.l.b16 %v228
    %v263 = vunpack.c.l.b16 %v229
    %v264 = vunpack.c.h.b16 %v229
    %v265 = vunpack.c.l.b16 %v230
    %v266 = vunpack.c.l.b16 %v231
    %v267 = vunpack.c.h.b16 %v231
    %v268 = vunpack.c.l.b16 %v232
    %v269 = vunpack.c.l.b16 %v233
    %v270 = vunpack.c.h.b16 %v233
    %v271 = vunpack.c.l.b16 %v234
    %v272 = vunpack.c.l.b16 %v235
    %v273 = vunpack.c.h.b16 %v235
    %v274 = vunpack.c.l.b16 %v236
    %v275 = vunpack.c.l.b16 %v237
    %v276 = vunpack.c.h.b16 %v237
    %v277 = vunpack.c.l.b16 %v238
    %v278 = vunpack.c.l.b16 %v239
    %v279 = vunpack.c.h.b16 %v239
    %v280 = vunpack.c.l.b16 %v240
    %v281 = vpack.c.b16 %v260, %v257
    %v282 = vpack.c.b16 %v261, %v258
    %v283 = vpack.c.b16 %v262, %v259
    %v284 = vpack.c.b16 %v266, %v263
    %v285 = vpack.c.b16 %v267, %v264
    %v286 = vpack.c.b16 %v268, %v265
    %v287 = vpack.c.b16 %v272, %v269
    %v288 = vpack.c.b16 %v273, %v270
    %v289 = vpack.c.b16 %v274, %v271
    %v290 = vpack.c.b16 %v278, %v275
    %v291 = vpack.c.b16 %v279, %v276
    %v292 = vpack.c.b16 %v280, %v277
    %vm305 = vcmask 523264
    %v307 = vsel %vm305, %v224, 0
    %309 = vmatprep.subr.bf16.mxu0 %v282
    %310 = vmatpush1.bf16.msra.mxu0 %v281
    %311 = vmatprep.subr.bf16.mxu0 %v285
    %312 = vmatpush1.bf16.msra.mxu0 %v284
    %313 = vmatprep.subr.bf16.mxu0 %v288
    %314 = vmatpush1.bf16.msra.mxu0 %v287
    %315 = vmatprep.subr.bf16.mxu0 %v291
    %316 = vmatpush1.bf16.msra.mxu0 %v290
    %317 = vmatprep.subr.bf16.mxu0 0
    %318 = vmatpush1.bf16.msra.mxu0 0
    %319 = vmatprep.subr.bf16.mxu0 0
    %320 = vmatpush1.bf16.msra.mxu0 0
    %321 = vmatprep.subr.bf16.mxu0 0
    %322 = vmatpush1.bf16.msra.mxu0 0
    %323 = vmatprep.subr.bf16.mxu0 0
    %324 = vmatpush1.bf16.msra.mxu0 0
    %325 = vmatprep.subr.bf16.mxu0 0
    %326 = vmatpush1.bf16.msra.mxu0 0
    %327 = vmatprep.subr.bf16.mxu0 0
    %328 = vmatpush1.bf16.msra.mxu0 0
    %329 = vmatprep.subr.bf16.mxu0 0
    %330 = vmatpush1.bf16.msra.mxu0 0
    %331 = vmatprep.subr.bf16.mxu0 0
    %332 = vmatpush1.bf16.msra.mxu0 0
    %333 = vmatprep.subr.bf16.mxu0 0
    %334 = vmatpush1.bf16.msra.mxu0 0
    %335 = vmatprep.subr.bf16.mxu0 0
    %336 = vmatpush1.bf16.msra.mxu0 0
    %337 = vmatprep.subr.bf16.mxu0 0
    %338 = vmatpush1.bf16.msra.mxu0 0
    %339 = vmatprep.subr.bf16.mxu0 0
    %340 = vmatpush1.bf16.msra.mxu0 0
    %341 = vmatprep.mubr.bf16.mxu0 0
    %342 = vmatmul.mubr.bf16.gmra.mrb[0].mxu0 %v307
    %v343 = vpop.f32.mrb[0].mxu0
    %v344 = vadd.f32 0.0, %v343
    %v345 = vpop.f32.mrb[0].mxu0
    %v346 = vadd.f32 0.0, %v345
    %v347 = vpop.f32.mrb[0].mxu0
    %v348 = vpop.f32.mrb[0].mxu0
    %349 = vdwg.mxu0
    %350 = vmatprep.subr.bf16.mxu0 0
    %351 = vmatpush1.bf16.msra.mxu0 %v283
    %352 = vmatprep.subr.bf16.mxu0 0
    %353 = vmatpush1.bf16.msra.mxu0 %v286
    %354 = vmatprep.subr.bf16.mxu0 0
    %355 = vmatpush1.bf16.msra.mxu0 %v289
    %356 = vmatprep.subr.bf16.mxu0 0
    %357 = vmatpush1.bf16.msra.mxu0 %v292
    %358 = vmatprep.subr.bf16.mxu0 0
    %359 = vmatpush1.bf16.msra.mxu0 0
    %360 = vmatprep.subr.bf16.mxu0 0
    %361 = vmatpush1.bf16.msra.mxu0 0
    %362 = vmatprep.subr.bf16.mxu0 0
    %363 = vmatpush1.bf16.msra.mxu0 0
    %364 = vmatprep.subr.bf16.mxu0 0
    %365 = vmatpush1.bf16.msra.mxu0 0
    %366 = vmatprep.subr.bf16.mxu0 0
    %367 = vmatpush1.bf16.msra.mxu0 0
    %368 = vmatprep.subr.bf16.mxu0 0
    %369 = vmatpush1.bf16.msra.mxu0 0
    %370 = vmatprep.subr.bf16.mxu0 0
    %371 = vmatpush1.bf16.msra.mxu0 0
    %372 = vmatprep.subr.bf16.mxu0 0
    %373 = vmatpush1.bf16.msra.mxu0 0
    %374 = vmatprep.subr.bf16.mxu0 0
    %375 = vmatpush1.bf16.msra.mxu0 0
    %376 = vmatprep.subr.bf16.mxu0 0
    %377 = vmatpush1.bf16.msra.mxu0 0
    %378 = vmatprep.subr.bf16.mxu0 0
    %379 = vmatpush1.bf16.msra.mxu0 0
    %380 = vmatprep.subr.bf16.mxu0 0
    %381 = vmatpush1.bf16.msra.mxu0 0
    %382 = vmatprep.mubr.bf16.mxu0 0
    %383 = vmatmul.mubr.bf16.gmra.mrb[0].mxu0 %v307
    %v384 = vpop.f32.mrb[0].mxu0
    %v385 = vadd.f32 0.0, %v384
    %v386 = vpop.f32.mrb[0].mxu0
    %v387 = vpop.f32.mrb[0].mxu0
    %v388 = vpop.f32.mrb[0].mxu0
    %389 = vdwg.mxu0
    %v390 = vstv %s219
    %v391 = vmul.f32 %v390, %v344
    %v392 = vmul.f32 %v390, %v346
    %v393 = vmul.f32 %v390, %v385
    %v394 = vld [vmem:[%s5] sm:$0x7]
    %v396 = vlaneseq
    %v397 = vshrl.u32 %v396, 7
    %v398 = vsub.s32 0, %v397
    %v399 = vrot.slane %v394, %v398
    %v400 = vlaneseq
    %v401 = vshrl.u32 %v400, 7
    %v402 = vsub.s32 1, %v401
    %v403 = vrot.slane %v394, %v402
    %v404 = vlaneseq
    %v405 = vshrl.u32 %v404, 7
    %v406 = vsub.s32 2, %v405
    %v407 = vrot.slane %v394, %v406
    %v411 = vadd.f32 %v391, %v399
    %v412 = vadd.f32 %v392, %v403
    %v413 = vadd.f32 %v393, %v407
    %v414 = vround.ne.pseudo %v411
    %v415 = vround.ne.pseudo %v412
    %v416 = vround.ne.pseudo %v413
    %v417 = vmax.f32 %v414, 0.0
    %v418 = vmax.f32 %v415, 0.0
    %v419 = vmax.f32 %v416, 0.0
    %v420 = vmin.f32 %v417, 255.0
    %v421 = vmin.f32 %v418, 255.0
    %v422 = vmin.f32 %v419, 255.0
    %v426 = vcombine.low %v420, %v421
    %v428 = vunpack.c.l.s4 1966171168
    %v429 = vunpack.c.0.s8 %v428
    %v430 = vlaneseq
    %v431 = vshrl.u32 %v430, 7
    %v432 = vsub.s32 %v429, %v431
    %v433 = vrot.slane %v426, %v432
    %v435 = vunpack.c.l.s4 1966171168
    %v436 = vunpack.c.0.s8 %v435
    %v437 = vlaneseq
    %v438 = vshrl.u32 %v437, 7
    %v439 = vsub.s32 %v436, %v438
    %v440 = vrot.slane %v422, %v439
    %v441 = vcombine.low %v433, %v440
    %v443 = vunpack.c.l.s4 1966171168
    %v444 = vunpack.c.0.s8 %v443
    %v445 = vlaneseq
    %v446 = vshrl.u32 %v445, 7
    %v447 = vsub.s32 %v444, %v446
    %v448 = vrot.slane %v441, %v447
    %v450 = vlaneseq
    %vm451 = vcmp.ge.s32.totalorder %v450, 0
    %vm452 = vcmp.lt.s32.totalorder %v450, 384
    %vm453 = vmand %vm451, %vm452
    %454 = vst.msk [vmem:[#allocation16] sm:$0x7] %vm453, %v448
    %s455 = sld [smem:[#allocation7 + $0x1]]
    %v456 = vld [vmem:[%s6] sm:$0xff]
    %v457 = vld [vmem:[%s6 + $0x8] sm:$0xff]
    %v458 = vround.ne.pseudo %v456
    %v459 = vround.ne.pseudo %v457
    %v460 = vmax.f32 %v458, 0.0
    %v461 = vmax.f32 %v459, 0.0
    %v462 = vmin.f32 %v460, 255.0
    %v463 = vmin.f32 %v461, 255.0
    %v464 = vpack.c.bf16 %v463, %v462
    %v465 = vld [vmem:[#allocation11] sm:$0xff]
    %v466 = vld [vmem:[#allocation11 + $0x8] sm:$0xff]
    %v467 = vld [vmem:[#allocation11 + $0x10] sm:$0xff]
    %v468 = vld [vmem:[#allocation11 + $0x18] sm:$0xff]
    %v469 = vld [vmem:[#allocation11 + $0x20] sm:$0xf]
    %v470 = vld [vmem:[#allocation11 + $0x24] sm:$0xff]
    %v471 = vld [vmem:[#allocation11 + $0x2c] sm:$0xff]
    %v472 = vld [vmem:[#allocation11 + $0x34] sm:$0xff]
    %v473 = vld [vmem:[#allocation11 + $0x3c] sm:$0xff]
    %v474 = vld [vmem:[#allocation11 + $0x44] sm:$0xf]
    %v485 = vunpack.c.l.b16 %v465
    %v486 = vunpack.c.h.b16 %v465
    %v487 = vunpack.c.l.b16 %v466
    %v488 = vunpack.c.h.b16 %v466
    %v489 = vunpack.c.l.b16 %v467
    %v490 = vunpack.c.h.b16 %v467
    %v491 = vunpack.c.l.b16 %v468
    %v492 = vunpack.c.h.b16 %v468
    %v493 = vunpack.c.l.b16 %v469
    %v494 = vunpack.c.l.b16 %v470
    %v495 = vunpack.c.h.b16 %v470
    %v496 = vunpack.c.l.b16 %v471
    %v497 = vunpack.c.h.b16 %v471
    %v498 = vunpack.c.l.b16 %v472
    %v499 = vunpack.c.h.b16 %v472
    %v500 = vunpack.c.l.b16 %v473
    %v501 = vunpack.c.h.b16 %v473
    %v502 = vunpack.c.l.b16 %v474
    %v503 = vpack.c.b16 %v494, %v485
    %v504 = vpack.c.b16 %v495, %v486
    %v505 = vpack.c.b16 %v496, %v487
    %v506 = vpack.c.b16 %v497, %v488
    %v507 = vpack.c.b16 %v498, %v489
    %v508 = vpack.c.b16 %v499, %v490
    %v509 = vpack.c.b16 %v500, %v491
    %v510 = vpack.c.b16 %v501, %v492
    %v511 = vpack.c.b16 %v502, %v493
    %vm521 = vcmask 130048
    %v523 = vsel %vm521, %v464, 0
    %525 = vmatprep.subr.bf16.mxu0 %v504
    %526 = vmatpush1.bf16.msra.mxu0 %v503
    %527 = vmatprep.subr.bf16.mxu0 0
    %528 = vmatpush1.bf16.msra.mxu0 0
    %529 = vmatprep.subr.bf16.mxu0 0
    %530 = vmatpush1.bf16.msra.mxu0 0
    %531 = vmatprep.subr.bf16.mxu0 0
    %532 = vmatpush1.bf16.msra.mxu0 0
    %533 = vmatprep.subr.bf16.mxu0 0
    %534 = vmatpush1.bf16.msra.mxu0 0
    %535 = vmatprep.subr.bf16.mxu0 0
    %536 = vmatpush1.bf16.msra.mxu0 0
    %537 = vmatprep.subr.bf16.mxu0 0
    %538 = vmatpush1.bf16.msra.mxu0 0
    %539 = vmatprep.subr.bf16.mxu0 0
    %540 = vmatpush1.bf16.msra.mxu0 0
    %541 = vmatprep.subr.bf16.mxu0 0
    %542 = vmatpush1.bf16.msra.mxu0 0
    %543 = vmatprep.subr.bf16.mxu0 0
    %544 = vmatpush1.bf16.msra.mxu0 0
    %545 = vmatprep.subr.bf16.mxu0 0
    %546 = vmatpush1.bf16.msra.mxu0 0
    %547 = vmatprep.subr.bf16.mxu0 0
    %548 = vmatpush1.bf16.msra.mxu0 0
    %549 = vmatprep.subr.bf16.mxu0 0
    %550 = vmatpush1.bf16.msra.mxu0 0
    %551 = vmatprep.subr.bf16.mxu0 0
    %552 = vmatpush1.bf16.msra.mxu0 0
    %553 = vmatprep.subr.bf16.mxu0 0
    %554 = vmatpush1.bf16.msra.mxu0 0
    %555 = vmatprep.subr.bf16.mxu0 0
    %556 = vmatpush1.bf16.msra.mxu0 0
    %557 = vmatprep.mubr.bf16.mxu0 0
    %558 = vmatmul.mubr.bf16.gmra.mrb[0].mxu0 %v523
    %v559 = vpop.f32.mrb[0].mxu0
    %v560 = vadd.f32 0.0, %v559
    %v561 = vpop.f32.mrb[0].mxu0
    %v562 = vadd.f32 0.0, %v561
    %v563 = vpop.f32.mrb[0].mxu0
    %v564 = vadd.f32 0.0, %v563
    %v565 = vpop.f32.mrb[0].mxu0
    %v566 = vadd.f32 0.0, %v565
    %567 = vdwg.mxu0
    %568 = vmatprep.subr.bf16.mxu0 %v506
    %569 = vmatpush1.bf16.msra.mxu0 %v505
    %570 = vmatprep.subr.bf16.mxu0 0
    %571 = vmatpush1.bf16.msra.mxu0 0
    %572 = vmatprep.subr.bf16.mxu0 0
    %573 = vmatpush1.bf16.msra.mxu0 0
    %574 = vmatprep.subr.bf16.mxu0 0
    %575 = vmatpush1.bf16.msra.mxu0 0
    %576 = vmatprep.subr.bf16.mxu0 0
    %577 = vmatpush1.bf16.msra.mxu0 0
    %578 = vmatprep.subr.bf16.mxu0 0
    %579 = vmatpush1.bf16.msra.mxu0 0
    %580 = vmatprep.subr.bf16.mxu0 0
    %581 = vmatpush1.bf16.msra.mxu0 0
    %582 = vmatprep.subr.bf16.mxu0 0
    %583 = vmatpush1.bf16.msra.mxu0 0
    %584 = vmatprep.subr.bf16.mxu0 0
    %585 = vmatpush1.bf16.msra.mxu0 0
    %586 = vmatprep.subr.bf16.mxu0 0
    %587 = vmatpush1.bf16.msra.mxu0 0
    %588 = vmatprep.subr.bf16.mxu0 0
    %589 = vmatpush1.bf16.msra.mxu0 0
    %590 = vmatprep.subr.bf16.mxu0 0
    %591 = vmatpush1.bf16.msra.mxu0 0
    %592 = vmatprep.subr.bf16.mxu0 0
    %593 = vmatpush1.bf16.msra.mxu0 0
    %594 = vmatprep.subr.bf16.mxu0 0
    %595 = vmatpush1.bf16.msra.mxu0 0
    %596 = vmatprep.subr.bf16.mxu0 0
    %597 = vmatpush1.bf16.msra.mxu0 0
    %598 = vmatprep.subr.bf16.mxu0 0
    %599 = vmatpush1.bf16.msra.mxu0 0
    %600 = vmatprep.mubr.bf16.mxu0 0
    %601 = vmatmul.mubr.bf16.gmra.mrb[0].mxu0 %v523
    %v602 = vpop.f32.mrb[0].mxu0
    %v603 = vadd.f32 0.0, %v602
    %v604 = vpop.f32.mrb[0].mxu0
    %v605 = vadd.f32 0.0, %v604
    %v606 = vpop.f32.mrb[0].mxu0
    %v607 = vadd.f32 0.0, %v606
    %v608 = vpop.f32.mrb[0].mxu0
    %v609 = vadd.f32 0.0, %v608
    %610 = vdwg.mxu0
    %611 = vmatprep.subr.bf16.mxu0 %v508
    %612 = vmatpush1.bf16.msra.mxu0 %v507
    %613 = vmatprep.subr.bf16.mxu0 0
    %614 = vmatpush1.bf16.msra.mxu0 0
    %615 = vmatprep.subr.bf16.mxu0 0
    %616 = vmatpush1.bf16.msra.mxu0 0
    %617 = vmatprep.subr.bf16.mxu0 0
    %618 = vmatpush1.bf16.msra.mxu0 0
    %619 = vmatprep.subr.bf16.mxu0 0
    %620 = vmatpush1.bf16.msra.mxu0 0
    %621 = vmatprep.subr.bf16.mxu0 0
    %622 = vmatpush1.bf16.msra.mxu0 0
    %623 = vmatprep.subr.bf16.mxu0 0
    %624 = vmatpush1.bf16.msra.mxu0 0
    %625 = vmatprep.subr.bf16.mxu0 0
    %626 = vmatpush1.bf16.msra.mxu0 0
    %627 = vmatprep.subr.bf16.mxu0 0
    %628 = vmatpush1.bf16.msra.mxu0 0
    %629 = vmatprep.subr.bf16.mxu0 0
    %630 = vmatpush1.bf16.msra.mxu0 0
    %631 = vmatprep.subr.bf16.mxu0 0
    %632 = vmatpush1.bf16.msra.mxu0 0
    %633 = vmatprep.subr.bf16.mxu0 0
    %634 = vmatpush1.bf16.msra.mxu0 0
    %635 = vmatprep.subr.bf16.mxu0 0
    %636 = vmatpush1.bf16.msra.mxu0 0
    %637 = vmatprep.subr.bf16.mxu0 0
    %638 = vmatpush1.bf16.msra.mxu0 0
    %639 = vmatprep.subr.bf16.mxu0 0
    %640 = vmatpush1.bf16.msra.mxu0 0
    %641 = vmatprep.subr.bf16.mxu0 0
    %642 = vmatpush1.bf16.msra.mxu0 0
    %643 = vmatprep.mubr.bf16.mxu0 0
    %644 = vmatmul.mubr.bf16.gmra.mrb[0].mxu0 %v523
    %v645 = vpop.f32.mrb[0].mxu0
    %v646 = vadd.f32 0.0, %v645
    %v647 = vpop.f32.mrb[0].mxu0
    %v648 = vadd.f32 0.0, %v647
    %v649 = vpop.f32.mrb[0].mxu0
    %v650 = vadd.f32 0.0, %v649
    %v651 = vpop.f32.mrb[0].mxu0
    %v652 = vadd.f32 0.0, %v651
    %653 = vdwg.mxu0
    %654 = vmatprep.subr.bf16.mxu0 %v510
    %655 = vmatpush1.bf16.msra.mxu0 %v509
    %656 = vmatprep.subr.bf16.mxu0 0
    %657 = vmatpush1.bf16.msra.mxu0 0
    %658 = vmatprep.subr.bf16.mxu0 0
    %659 = vmatpush1.bf16.msra.mxu0 0
    %660 = vmatprep.subr.bf16.mxu0 0
    %661 = vmatpush1.bf16.msra.mxu0 0
    %662 = vmatprep.subr.bf16.mxu0 0
    %663 = vmatpush1.bf16.msra.mxu0 0
    %664 = vmatprep.subr.bf16.mxu0 0
    %665 = vmatpush1.bf16.msra.mxu0 0
    %666 = vmatprep.subr.bf16.mxu0 0
    %667 = vmatpush1.bf16.msra.mxu0 0
    %668 = vmatprep.subr.bf16.mxu0 0
    %669 = vmatpush1.bf16.msra.mxu0 0
    %670 = vmatprep.subr.bf16.mxu0 0
    %671 = vmatpush1.bf16.msra.mxu0 0
    %672 = vmatprep.subr.bf16.mxu0 0
    %673 = vmatpush1.bf16.msra.mxu0 0
    %674 = vmatprep.subr.bf16.mxu0 0
    %675 = vmatpush1.bf16.msra.mxu0 0
    %676 = vmatprep.subr.bf16.mxu0 0
    %677 = vmatpush1.bf16.msra.mxu0 0
    %678 = vmatprep.subr.bf16.mxu0 0
    %679 = vmatpush1.bf16.msra.mxu0 0
    %680 = vmatprep.subr.bf16.mxu0 0
    %681 = vmatpush1.bf16.msra.mxu0 0
    %682 = vmatprep.subr.bf16.mxu0 0
    %683 = vmatpush1.bf16.msra.mxu0 0
    %684 = vmatprep.subr.bf16.mxu0 0
    %685 = vmatpush1.bf16.msra.mxu0 0
    %686 = vmatprep.mubr.bf16.mxu0 0
    %687 = vmatmul.mubr.bf16.gmra.mrb[0].mxu0 %v523
    %v688 = vpop.f32.mrb[0].mxu0
    %v689 = vadd.f32 0.0, %v688
    %v690 = vpop.f32.mrb[0].mxu0
    %v691 = vadd.f32 0.0, %v690
    %v692 = vpop.f32.mrb[0].mxu0
    %v693 = vadd.f32 0.0, %v692
    %v694 = vpop.f32.mrb[0].mxu0
    %v695 = vadd.f32 0.0, %v694
    %696 = vdwg.mxu0
    %697 = vmatprep.subr.bf16.mxu0 0
    %698 = vmatpush1.bf16.msra.mxu0 %v511
    %699 = vmatprep.subr.bf16.mxu0 0
    %700 = vmatpush1.bf16.msra.mxu0 0
    %701 = vmatprep.subr.bf16.mxu0 0
    %702 = vmatpush1.bf16.msra.mxu0 0
    %703 = vmatprep.subr.bf16.mxu0 0
    %704 = vmatpush1.bf16.msra.mxu0 0
    %705 = vmatprep.subr.bf16.mxu0 0
    %706 = vmatpush1.bf16.msra.mxu0 0
    %707 = vmatprep.subr.bf16.mxu0 0
    %708 = vmatpush1.bf16.msra.mxu0 0
    %709 = vmatprep.subr.bf16.mxu0 0
    %710 = vmatpush1.bf16.msra.mxu0 0
    %711 = vmatprep.subr.bf16.mxu0 0
    %712 = vmatpush1.bf16.msra.mxu0 0
    %713 = vmatprep.subr.bf16.mxu0 0
    %714 = vmatpush1.bf16.msra.mxu0 0
    %715 = vmatprep.subr.bf16.mxu0 0
    %716 = vmatpush1.bf16.msra.mxu0 0
    %717 = vmatprep.subr.bf16.mxu0 0
    %718 = vmatpush1.bf16.msra.mxu0 0
    %719 = vmatprep.subr.bf16.mxu0 0
    %720 = vmatpush1.bf16.msra.mxu0 0
    %721 = vmatprep.subr.bf16.mxu0 0
    %722 = vmatpush1.bf16.msra.mxu0 0
    %723 = vmatprep.subr.bf16.mxu0 0
    %724 = vmatpush1.bf16.msra.mxu0 0
    %725 = vmatprep.subr.bf16.mxu0 0
    %726 = vmatpush1.bf16.msra.mxu0 0
    %727 = vmatprep.subr.bf16.mxu0 0
    %728 = vmatpush1.bf16.msra.mxu0 0
    %729 = vmatprep.mubr.bf16.mxu0 0
    %730 = vmatmul.mubr.bf16.gmra.mrb[0].mxu0 %v523
    %v731 = vpop.f32.mrb[0].mxu0
    %v732 = vadd.f32 0.0, %v731
    %v733 = vpop.f32.mrb[0].mxu0
    %v734 = vpop.f32.mrb[0].mxu0
    %v735 = vadd.f32 0.0, %v734
    %v736 = vpop.f32.mrb[0].mxu0
    %737 = vdwg.mxu0
    %v738 = vpack.c.bf16 %v564, %v560
    %v739 = vpack.c.bf16 %v566, %v562
    %v740 = vpack.c.bf16 %v607, %v603
    %v741 = vpack.c.bf16 %v609, %v605
    %v742 = vpack.c.bf16 %v650, %v646
    %v743 = vpack.c.bf16 %v652, %v648
    %v744 = vpack.c.bf16 %v693, %v689
    %v745 = vpack.c.bf16 %v695, %v691
    %v746 = vpack.c.bf16 %v735, %v732
    %v747 = vld [vmem:[#allocation12] sm:$0xff]
    %v748 = vld [vmem:[#allocation12 + $0x8] sm:$0xff]
    %v749 = vld [vmem:[#allocation12 + $0x10] sm:$0xff]
    %v750 = vld [vmem:[#allocation12 + $0x18] sm:$0xff]
    %v751 = vld [vmem:[#allocation12 + $0x20] sm:$0xff]
    %v757 = vunpack.c.l.b16 %v747
    %v758 = vunpack.c.h.b16 %v747
    %v759 = vunpack.c.l.b16 %v748
    %v760 = vunpack.c.h.b16 %v748
    %v761 = vunpack.c.l.b16 %v749
    %v762 = vunpack.c.h.b16 %v749
    %v763 = vunpack.c.l.b16 %v750
    %v764 = vunpack.c.h.b16 %v750
    %v765 = vunpack.c.l.b16 %v751
    %v766 = vunpack.c.h.b16 %v751
    %v767 = vpack.c.b16 %v759, %v757
    %v768 = vpack.c.b16 %v760, %v758
    %v769 = vpack.c.b16 %v763, %v761
    %v770 = vpack.c.b16 %v764, %v762
    %v771 = vpack.c.b16 %v765, %v765
    %v772 = vpack.c.b16 %v766, %v766
    %v777 = vsel %vm521, %v768, 0
    %v780 = vsel %vm521, %v770, 0
    %v783 = vsel %vm521, %v772, 0
    %785 = vmatprep.subr.bf16.mxu0 0
    %786 = vmatpush1.bf16.msra.mxu0 %v738
    %787 = vmatprep.subr.bf16.mxu0 0
    %788 = vmatpush1.bf16.msra.mxu0 %v739
    %789 = vmatprep.subr.bf16.mxu0 0
    %790 = vmatpush1.bf16.msra.mxu0 %v740
    %791 = vmatprep.subr.bf16.mxu0 0
    %792 = vmatpush1.bf16.msra.mxu0 %v741
    %793 = vmatprep.subr.bf16.mxu0 0
    %794 = vmatpush1.bf16.msra.mxu0 %v742
    %795 = vmatprep.subr.bf16.mxu0 0
    %796 = vmatpush1.bf16.msra.mxu0 %v743
    %797 = vmatprep.subr.bf16.mxu0 0
    %798 = vmatpush1.bf16.msra.mxu0 %v744
    %799 = vmatprep.subr.bf16.mxu0 0
    %800 = vmatpush1.bf16.msra.mxu0 %v745
    %801 = vmatprep.subr.bf16.mxu0 0
    %802 = vmatpush1.bf16.msra.mxu0 %v746
    %803 = vmatprep.subr.bf16.mxu0 0
    %804 = vmatpush1.bf16.msra.mxu0 0
    %805 = vmatprep.subr.bf16.mxu0 0
    %806 = vmatpush1.bf16.msra.mxu0 0
    %807 = vmatprep.subr.bf16.mxu0 0
    %808 = vmatpush1.bf16.msra.mxu0 0
    %809 = vmatprep.subr.bf16.mxu0 0
    %810 = vmatpush1.bf16.msra.mxu0 0
    %811 = vmatprep.subr.bf16.mxu0 0
    %812 = vmatpush1.bf16.msra.mxu0 0
    %813 = vmatprep.subr.bf16.mxu0 0
    %814 = vmatpush1.bf16.msra.mxu0 0
    %815 = vmatprep.subr.bf16.mxu0 0
    %816 = vmatpush1.bf16.msra.mxu0 0
    %817 = vmatprep.mubr.bf16.mxu0 %v777
    %818 = vmatmul.mubr.bf16.gmra.mrb[0].mxu0 %v767
    %v819 = vpop.f32.mrb[0].mxu0
    %v820 = vadd.f32 0.0, %v819
    %v821 = vpop.f32.mrb[0].mxu0
    %v822 = vpop.f32.mrb[0].mxu0
    %v823 = vadd.f32 0.0, %v822
    %v824 = vpop.f32.mrb[0].mxu0
    %825 = vmatprep.mubr.bf16.mxu0 %v780
    %826 = vmatmul.mubr.bf16.gmra.mrb[0].mxu0 %v769
    %v827 = vpop.f32.mrb[0].mxu0
    %v828 = vadd.f32 0.0, %v827
    %v829 = vpop.f32.mrb[0].mxu0
    %v830 = vpop.f32.mrb[0].mxu0
    %v831 = vadd.f32 0.0, %v830
    %v832 = vpop.f32.mrb[0].mxu0
    %833 = vmatprep.mubr.bf16.mxu0 %v783
    %834 = vmatmul.mubr.bf16.gmra.mrb[0].mxu0 %v771
    %v835 = vpop.f32.mrb[0].mxu0
    %v836 = vadd.f32 0.0, %v835
    %v837 = vpop.f32.mrb[0].mxu0
    %v838 = vpop.f32.mrb[0].mxu0
    %v839 = vpop.f32.mrb[0].mxu0
    %840 = vdwg.mxu0
    %v841 = vstv %s455
    %v842 = vmul.f32 %v841, %v820
    %v843 = vmul.f32 %v841, %v823
    %v844 = vmul.f32 %v841, %v828
    %v845 = vmul.f32 %v841, %v831
    %v846 = vmul.f32 %v841, %v836
    %v847 = vld [vmem:[#allocation14] sm:$0xff]
    %v848 = vld [vmem:[#allocation14 + $0x8] sm:$0xff]
    %v849 = vld [vmem:[#allocation14 + $0x10] sm:$0xff]
    %v850 = vld [vmem:[#allocation14 + $0x18] sm:$0xff]
    %v851 = vld [vmem:[#allocation14 + $0x20] sm:$0xff]
    %v852 = vadd.f32 %v842, %v847
    %v853 = vadd.f32 %v843, %v848
    %v854 = vadd.f32 %v844, %v849
    %v855 = vadd.f32 %v845, %v850
    %v856 = vadd.f32 %v846, %v851
    %v857 = vround.ne.pseudo %v852
    %v858 = vround.ne.pseudo %v853
    %v859 = vround.ne.pseudo %v854
    %v860 = vround.ne.pseudo %v855
    %v861 = vround.ne.pseudo %v856
    %v862 = vmax.f32 %v857, 0.0
    %v863 = vmax.f32 %v858, 0.0
    %v864 = vmax.f32 %v859, 0.0
    %v865 = vmax.f32 %v860, 0.0
    %v866 = vmax.f32 %v861, 0.0
    %v867 = vmin.f32 %v862, 255.0
    %v868 = vmin.f32 %v863, 255.0
    %v869 = vmin.f32 %v864, 255.0
    %v870 = vmin.f32 %v865, 255.0
    %v871 = vmin.f32 %v866, 255.0
    %872 = vst [vmem:[#allocation18] sm:$0xff] %v867
    %873 = vst [vmem:[#allocation18 + $0x8] sm:$0xff] %v868
    %874 = vst [vmem:[#allocation18 + $0x10] sm:$0xff] %v869
    %875 = vst [vmem:[#allocation18 + $0x18] sm:$0xff] %v870
    %876 = vst [vmem:[#allocation18 + $0x20] sm:$0xff] %v871
    // Predicated region
    $region70: #{tpu_custom_call.1} parent=1 // pred_check
      _
    $region71: #{tpu_custom_call.1} parent=1 // pred_check_branch
      %878 = sbr.rel (0) target = $region73
    $region72: #{tpu_custom_call.1} parent=1 // pred_region
      %s880 = ssub.s32 256, 256
      %881 = vsyncadd [#allocation4], %s880
      %s882 = sshll.u32 [#allocation15], 4
      %s883 = int_to_ptr.vmem [resolvable:$true] %s882
      %888 = dma.vmem_to_hbm [thread:$0]  %s883, 256, %s10, [#allocation4], 128, 128, 8
    $region73: #{tpu_custom_call.1} parent=1 // pred_fallthru
      _
    // Predicated region
    $region74: #{tpu_custom_call.1} parent=1 // pred_check
      _
    $region75: #{tpu_custom_call.1} parent=1 // pred_check_branch
      %890 = sbr.rel (0) target = $region77
    $region76: #{tpu_custom_call.1} parent=1 // pred_region
      %s892 = ssub.s32 48, 48
      %893 = vsyncadd [#allocation17], %s892
      %s895 = sshll.u32 [#allocation16], 4
      %s896 = int_to_ptr.vmem [resolvable:$true] %s895
      %898 = dma.vmem_to_hbm [thread:$0]  %s896, 48, %s11, [#allocation17]
    $region77: #{tpu_custom_call.1} parent=1 // pred_fallthru
      _
    // Predicated region
    $region78: #{tpu_custom_call.1} parent=1 // pred_check
      _
    $region79: #{tpu_custom_call.1} parent=1 // pred_check_branch
      %900 = sbr.rel (0) target = $region81
    $region80: #{tpu_custom_call.1} parent=1 // pred_region
      %s902 = ssub.s32 640, 640
      %903 = vsyncadd [#allocation17], %s902
      %s904 = sshll.u32 [#allocation18], 4
      %s905 = int_to_ptr.vmem [resolvable:$true] %s904
      %910 = dma.vmem_to_hbm [thread:$0]  %s905, 640, %s12, [#allocation17], 128, 128, 8
    $region81: #{tpu_custom_call.1} parent=1 // pred_fallthru
      _
    // Predicated region
    $region82: #{tpu_custom_call.1} parent=1 // pred_check
      _
    $region83: #{tpu_custom_call.1} parent=1 // pred_check_branch
      %912 = sbr.rel (0) target = $region85
    $region84: #{tpu_custom_call.1} parent=1 // pred_region
      %913 = dma.done [#allocation4], 256
    $region85: #{tpu_custom_call.1} parent=1 // pred_fallthru
      _
    // Predicated region
    $region86: #{tpu_custom_call.1} parent=1 // pred_check
      _
    $region87: #{tpu_custom_call.1} parent=1 // pred_check_branch
      %915 = sbr.rel (0) target = $region89
    $region88: #{tpu_custom_call.1} parent=1 // pred_region
      %916 = dma.done [#allocation17], 48
    $region89: #{tpu_custom_call.1} parent=1 // pred_fallthru
      _
    // Predicated region
    $region90: #{tpu_custom_call.1} parent=1 // pred_check
      _
    $region91: #{tpu_custom_call.1} parent=1 // pred_check_branch
      %918 = sbr.rel (0) target = $region93
    $region92: #{tpu_custom_call.1} parent=1 // pred_region
      %919 = dma.done [#allocation17], 640
    $region93: #{tpu_custom_call.1} parent=1 // pred_fallthru
      _
    %920 = vsyncpa [#allocation3], 1
    %921 = vsyncpa [#allocation10], 1
    %922 = vsyncpa [#allocation13], 1
    %923 = vsyncpa [#allocation4], 1
    %924 = vsyncpa [#allocation17], 1
    %925 = vsyncpa [#allocation5], 1
    %926 = vsyncpa [#allocation6], 1

</llo_original>
